<compile_context>
chip_gen: v6e
topology: v6e:2x2x1
jax: 0.10.0
libtpu: 0.0.40
codegen_flags: <defaults>
</compile_context>

<pallas_src>
import math

import jax
import jax.numpy as jnp
from jax import lax
from jax.experimental import pallas as pl
from jax.experimental.pallas import tpu as pltpu


# ----------------------------- kernel ----------------------------------------

def proj_gelu_kernel(x_ref, w_ref, b_ref, o_ref):
    """o = GELU(x @ W + b) for one (tm, tn) output tile, full-K in one shot.

    x_ref: (tm, Df) f32 activations (cast to bf16 in-kernel)
    w_ref: (Df, tn) bf16 weight tile (VMEM-resident across the inner M axis)
    b_ref: (1, tn)  f32 bias
    o_ref: (tm, tn) output
    """
    x = x_ref[...].astype(jnp.bfloat16)            # VPU cast, hidden under MXU
    y = jnp.dot(x, w_ref[...], preferred_element_type=jnp.float32)
    y = y + b_ref[...]
    inv_sqrt2 = jnp.float32(1.0 / math.sqrt(2.0))
    g = 0.5 * y * (1.0 + lax.erf(y * inv_sqrt2))   # exact GELU (f32), = nn.GELU()
    # TODO(synk): nn.Dropout is identity in eval mode; training-mode dropout
    # would use pltpu.prng_seed / pltpu.prng_random_bits here.
    o_ref[...] = g.astype(o_ref.dtype)


# ----------------------------- wrapper ----------------------------------------

def _round_up(x, m):
    return (x + m - 1) // m * m


def pretrained_embedding_head(features, input_ids, proj_w, proj_b, pad_idx,
                              *, tm=512, tn_cap=2048,
                              vmem_budget=48 * 1024 * 1024):
    """features: [B, S, d_features] f32, input_ids: [B, S] i32,
    proj_w: [d_features, d_model], proj_b: [d_model]."""
    B, S, Df = features.shape
    Dm = proj_w.shape[1]
    M = B * S
    in_itemsize = jnp.dtype(features.dtype).itemsize
    out_itemsize = in_itemsize

    # ---- N (d_model) tiling: lane-dense, MXU-friendly, tn divides Dm_p -------
    if Dm % 128 == 0:
        Dm_base = Dm                      # already lane-aligned: no pad / no slice
    elif Dm > 128:
        Dm_base = _round_up(Dm, 256)      # 256-wide MXU on v6e/v7x
    else:
        Dm_base = 128
    tn = 128
    for cand in range(min(tn_cap, Dm_base), 127, -128):
        if Dm_base % cand == 0:           # largest 128-multiple divisor <= cap
            tn = cand
            break
    Dm_p = _round_up(Dm_base, tn)         # == Dm_base (tn divides it)

    # ---- M tiling: multiple of 8; try to give both v7x TCs >=1 tile ----------
    tm = max(8, (min(tm, _round_up(M, 8)) // 8) * 8)
    while tm >= 256 and _round_up(M, tm) // tm < 2:
        tm //= 2

    # ---- keep the double-buffered resident set under ~48 MiB (v7x: 64 MiB) ---
    def footprint(tm_, tn_):
        return (2 * tm_ * Df * in_itemsize     # activation tiles (input dtype)
                + 2 * Df * tn_ * 2             # bf16 weight tiles
                + 2 * tm_ * tn_ * out_itemsize # output tiles
                + 2 * tn_ * 4)                 # bias
    while footprint(tm, tn) > vmem_budget and (tm > 128 or tn > 128):
        if tm > 128:                       # shrink M first: weight stays resident,
            tm = max(128, tm // 2)         # only grid-step overhead grows
        else:
            tn = max(128, tn // 2)
            Dm_p = _round_up(Dm_base, tn)
    M_p = _round_up(M, tm)

    # ---- operands: NO padded/cast activation copy in HBM ---------------------
    x = features.reshape(M, Df)
    if M_p != M:
        x = jnp.pad(x, ((0, M_p - M), (0, 0)))
    w = proj_w.astype(jnp.bfloat16)            # small one-off weight cast
    b = proj_b.astype(jnp.float32)
    if Dm_p != Dm:
        w = jnp.pad(w, ((0, 0), (0, Dm_p - Dm)))
        b = jnp.pad(b, (0, Dm_p - Dm))
    b = b.reshape(1, Dm_p)

    # Weight-tile axis (j) outermost so each weight tile is DMA'd once and
    # stays resident while the inner M axis streams activations.
    grid = (Dm_p // tn, M_p // tm)

    vmem_limit = int(min(56 * 1024 * 1024,                       # v7x-safe cap
                         max(32 * 1024 * 1024,                   # v5e default is 16
                             footprint(tm, tn) + (4 << 20))))

    out = pl.pallas_call(
        proj_gelu_kernel,
        out_shape=jax.ShapeDtypeStruct((M_p, Dm_p), features.dtype),
        grid_spec=pltpu.PrefetchScalarGridSpec(
            num_scalar_prefetch=0,
            grid=grid,
            in_specs=[
                pl.BlockSpec((tm, Df), lambda j, i: (i, 0)),   # activations (f32)
                pl.BlockSpec((Df, tn), lambda j, i: (0, j)),   # weight (resident per j)
                pl.BlockSpec((1, tn), lambda j, i: (0, j)),    # bias (f32)
            ],
            out_specs=pl.BlockSpec((tm, tn), lambda j, i: (i, j)),
        ),
        compiler_params=pltpu.CompilerParams(
            dimension_semantics=("arbitrary", "parallel"),
            vmem_limit_bytes=vmem_limit),
    )(x, w, b)

    if M_p != M:
        out = out[:M]
    if Dm_p != Dm:
        out = out[:, :Dm]
    out = out.reshape(B, S, Dm)

    # Padding mask: trivial elementwise op -> plain XLA (fused), no kernel.
    mask = jnp.where(input_ids == pad_idx,
                     jnp.float32(-1e5), jnp.float32(0.0))
    return out, mask


# ----------------------------- main -------------------------------------------

if __name__ == "__main__":
    # small shapes consistent with the module's forward
    B, S = 2, 8                 # batch of texts, tokenizer max_length
    d_features, d_model = 32, 64
    pad_token_id = 0

    key = jax.random.PRNGKey(0)
    k_feat, k_w, k_b = jax.random.split(key, 3)

    # TODO(synk): tokenizer + pretrained transformer encoder (AutoModel) have
    # no Pallas equivalent; `features` stands in for encoder.last_hidden_state.
    features = jax.random.normal(k_feat, (B, S, d_features), dtype=jnp.float32)

    # deterministic proj parameters (nn.Linear(d_features, d_model))
    bound = 1.0 / math.sqrt(d_features)
    proj_w = jax.random.uniform(k_w, (d_features, d_model),
                                minval=-bound, maxval=bound, dtype=jnp.float32)
    proj_b = jax.random.uniform(k_b, (d_model,),
                                minval=-bound, maxval=bound, dtype=jnp.float32)

    # deterministic token ids with trailing padding (pad_token_id = 0)
    input_ids = jnp.array(
        [[5, 17, 3, 9, 22, 0, 0, 0],
         [7, 2, 11, 0, 0, 0, 0, 0]], dtype=jnp.int32)

    out, mask = pretrained_embedding_head(
        features, input_ids, proj_w, proj_b, pad_token_id)
    out = jax.block_until_ready(out)
    mask = jax.block_until_ready(mask)

    # reference check in plain JAX
    x_f = features.reshape(B * S, d_features)
    # tight check vs. bf16-rounded operands (kernel's actual matmul inputs)
    x_bf = x_f.astype(jnp.bfloat16).astype(jnp.float32)
    w_bf = proj_w.astype(jnp.bfloat16).astype(jnp.float32)
    ref_bf = jax.nn.gelu(x_bf @ w_bf + proj_b,
                         approximate=False).reshape(B, S, d_model)
    # looser check vs. pure-f32 module semantics
    ref_f32 = jax.nn.gelu(x_f @ proj_w + proj_b,
                          approximate=False).reshape(B, S, d_model)
    ref_mask = jnp.where(input_ids == pad_token_id, -1e5, 0.0).astype(jnp.float32)

    assert out.shape == (B, S, d_model) and mask.shape == (B, S)
    assert jnp.allclose(out, ref_bf, atol=1e-4, rtol=1e-4)
    assert jnp.allclose(out, ref_f32, atol=3e-2, rtol=3e-2)
    assert jnp.allclose(mask, ref_mask)

    print("KERNEL_OK")
</pallas_src>

<mosaic_0001>
module attributes {stable_mosaic.version = 11 : i64} {
  func.func @proj_gelu_kernel(%arg0: i32, %arg1: i32, %arg2: memref<16x32xf32, #tpu.memory_space<vmem>>, %arg3: memref<32x128xbf16, #tpu.memory_space<vmem>>, %arg4: memref<1x128xf32, #tpu.memory_space<vmem>>, %arg5: memref<16x128xf32, #tpu.memory_space<vmem>>) attributes {dimension_semantics = [#tpu.dimension_semantics<arbitrary>, #tpu.dimension_semantics<parallel>], iteration_bounds = array<i64: 1, 1>, scalar_prefetch = 0 : i64, scratch_operands = 0 : i64, tpu.core_type = #tpu.core_type<tc>, window_params = [{transform_indices = @transform_0, window_bounds = array<i64: 16, 32>}, {transform_indices = @transform_1, window_bounds = array<i64: 32, 128>}, {transform_indices = @transform_2, window_bounds = array<i64: 1, 128>}, {transform_indices = @transform_3, window_bounds = array<i64: 16, 128>}]} {
    %c0 = arith.constant 0 : index
    %c0_0 = arith.constant 0 : index
    %0 = vector.load %arg2[%c0, %c0_0] : memref<16x32xf32, #tpu.memory_space<vmem>>, vector<16x32xf32>
    %1 = arith.truncf %0 : vector<16x32xf32> to vector<16x32xbf16>
    %c0_1 = arith.constant 0 : index
    %c0_2 = arith.constant 0 : index
    %2 = vector.load %arg3[%c0_1, %c0_2] : memref<32x128xbf16, #tpu.memory_space<vmem>>, vector<32x128xbf16>
    %cst = arith.constant dense<0.000000e+00> : vector<16x128xf32>
    %3 = tpu.matmul %1, %2, %cst {dimension_numbers = #tpu.dot_dimension_numbers<[1], [0], [0], [1], [0, 0, 1, 1], [], []>} : vector<16x32xbf16>, vector<32x128xbf16>, vector<16x128xf32> -> vector<16x128xf32>
    %c0_3 = arith.constant 0 : index
    %c0_4 = arith.constant 0 : index
    %4 = vector.load %arg4[%c0_3, %c0_4] : memref<1x128xf32, #tpu.memory_space<vmem>>, vector<1x128xf32>
    %5 = vector.broadcast %4 : vector<1x128xf32> to vector<16x128xf32>
    %6 = arith.addf %3, %5 : vector<16x128xf32>
    %cst_5 = arith.constant 5.000000e-01 : f32
    %7 = vector.broadcast %cst_5 : f32 to vector<16x128xf32>
    %8 = arith.mulf %7, %6 : vector<16x128xf32>
    %cst_6 = arith.constant 0.707106769 : f32
    %9 = vector.broadcast %cst_6 : f32 to vector<16x128xf32>
    %10 = arith.mulf %6, %9 : vector<16x128xf32>
    %11 = math.erf %10 : vector<16x128xf32>
    %cst_7 = arith.constant 1.000000e+00 : f32
    %12 = vector.broadcast %cst_7 : f32 to vector<16x128xf32>
    %13 = arith.addf %12, %11 : vector<16x128xf32>
    %14 = arith.mulf %8, %13 : vector<16x128xf32>
    %c0_8 = arith.constant 0 : index
    %c0_9 = arith.constant 0 : index
    %15 = vector.load %arg5[%c0_8, %c0_9] : memref<16x128xf32, #tpu.memory_space<vmem>>, vector<16x128xf32>
    tpu.vector_store %arg5[%c0_8, %c0_9], %14 {strides = array<i32>} : memref<16x128xf32, #tpu.memory_space<vmem>>, vector<16x128xf32>,
    return
  }
  func.func @transform_0(%arg0: i32, %arg1: i32) -> (i32, i32) {
    %c0_i32 = arith.constant 0 : i32
    %c0_i32_0 = arith.constant 0 : i32
    return %arg1, %c0_i32 : i32, i32
  }
  func.func @transform_1(%arg0: i32, %arg1: i32) -> (i32, i32) {
    %c0_i32 = arith.constant 0 : i32
    %c0_i32_0 = arith.constant 0 : i32
    return %c0_i32, %arg0 : i32, i32
  }
  func.func @transform_2(%arg0: i32, %arg1: i32) -> (i32, i32) {
    %c0_i32 = arith.constant 0 : i32
    %c0_i32_0 = arith.constant 0 : i32
    return %c0_i32, %arg0 : i32, i32
  }
  func.func @transform_3(%arg0: i32, %arg1: i32) -> (i32, i32) {
    %c0_i32 = arith.constant 0 : i32
    return %arg1, %arg0 : i32, i32
  }
}

</mosaic_0001>

<llo_original>
// kernel: tpu_custom_call.1
$region0: #{tpu_custom_call.1}
  #allocation0 [shape = 'u32[]', space=smem, size = 0x4, offset = 0x4, fixed_abs, tag = 'smem constant byte address 0x4 - core index']
  #allocation1 [shape = 'u32[144,128]{1,0:T(1,128)}', space=vmem, size = 0x12000, scoped, tag = 'internal scratch']
  %s0 = inlined_call_operand.hbm [shape: f32[16,32], index: 0, kind: input, shape index: {}]
  %s1 = inlined_call_operand.hbm [shape: bf16[32,128], index: 1, kind: input, shape index: {}]
  %s2 = inlined_call_operand.vmem [shape: f32[1,128], index: 2, kind: input, shape index: {}]
  %s3 = inlined_call_operand.hbm [shape: f32[16,128], index: 3, kind: output, shape index: {}]
  %s4 = sld [smem:[#allocation0]]
  $region30: #{tpu_custom_call.1} parent=0
    _
  %s6 = ssub.s32 1, %s4
  %s7 = scalar_select 0, %s6, %s4
  $region1: #{tpu_custom_call.1} parent=0
    #allocation2 [shape = 'u8[8192]{0}', space=vmem, size = 0x2000, scoped, tag = 'input window, operand 0, single buffered']
    #allocation3 [shape = 's32[1]{0}', space=sflag, size = 0x4, scoped, tag = 'scoped memory for tpu_custom_call.1']
    #allocation4 [shape = 's32[1]{0}', space=sflag, size = 0x4, scoped, tag = 'scoped memory for tpu_custom_call.1']
    #allocation5 [shape = 'u8[8192]{0}', space=vmem, size = 0x2000, scoped, tag = 'input window, operand 1, single buffered']
    #allocation6 [shape = 's32[1]{0}', space=sflag, size = 0x4, scoped, tag = 'scoped memory for tpu_custom_call.1']
    #allocation7 [shape = 'u8[8192]{0}', space=vmem, size = 0x2000, scoped, tag = 'output window, operand 0, single buffered']
    %8 = vsyncpa [#allocation3], 0
    %9 = vsyncpa [#allocation6], 0
    %10 = vsyncpa [#allocation4], 0
    // Predicated region
    $region2: #{tpu_custom_call.1} parent=1 // pred_check
      _
    $region3: #{tpu_custom_call.1} parent=1 // pred_check_branch
      %12 = sbr.rel (0) target = $region5
    $region4: #{tpu_custom_call.1} parent=1 // pred_region
      %s14 = ssub.s32 256, 256
      %15 = vsyncadd [#allocation3], %s14
      %s16 = sshll.u32 [#allocation2], 4
      %s17 = int_to_ptr.vmem [resolvable:$true] %s16
      %22 = dma.hbm_to_vmem [thread:$0]  %s0, 256, %s17, [#allocation3], 128, 128, 8
    $region5: #{tpu_custom_call.1} parent=1 // pred_fallthru
      _
    // Predicated region
    $region6: #{tpu_custom_call.1} parent=1 // pred_check
      _
    $region7: #{tpu_custom_call.1} parent=1 // pred_check_branch
      %24 = sbr.rel (0) target = $region9
    $region8: #{tpu_custom_call.1} parent=1 // pred_region
      %s26 = ssub.s32 256, 256
      %27 = vsyncadd [#allocation6], %s26
      %s28 = sshll.u32 [#allocation5], 4
      %s29 = int_to_ptr.vmem [resolvable:$true] %s28
      %34 = dma.hbm_to_vmem [thread:$0]  %s1, 256, %s29, [#allocation6], 64, 64, 4
    $region9: #{tpu_custom_call.1} parent=1 // pred_fallthru
      _
    // Predicated region
    $region10: #{tpu_custom_call.1} parent=1 // pred_check
      _
    $region11: #{tpu_custom_call.1} parent=1 // pred_check_branch
      %36 = sbr.rel (0) target = $region13
    $region12: #{tpu_custom_call.1} parent=1 // pred_region
      _
    $region13: #{tpu_custom_call.1} parent=1 // pred_fallthru
      _
    // Predicated region
    $region14: #{tpu_custom_call.1} parent=1 // pred_check
      _
    $region15: #{tpu_custom_call.1} parent=1 // pred_check_branch
      %38 = sbr.rel (0) target = $region17
    $region16: #{tpu_custom_call.1} parent=1 // pred_region
      %39 = dma.done [#allocation3], 256
    $region17: #{tpu_custom_call.1} parent=1 // pred_fallthru
      _
    // Predicated region
    $region18: #{tpu_custom_call.1} parent=1 // pred_check
      _
    $region19: #{tpu_custom_call.1} parent=1 // pred_check_branch
      %41 = sbr.rel (0) target = $region21
    $region20: #{tpu_custom_call.1} parent=1 // pred_region
      %42 = dma.done [#allocation6], 256
    $region21: #{tpu_custom_call.1} parent=1 // pred_fallthru
      _
    %v44 = vld [vmem:[#allocation2] sm:$0xff]
    %v45 = vld [vmem:[#allocation2 + $0x8] sm:$0xff]
    %v46 = vpack.c.bf16 %v45, %v44
    %v47 = vld [vmem:[#allocation5] sm:$0xf]
    %v48 = vld [vmem:[#allocation5 + $0x4] sm:$0xf]
    %v49 = vld [vmem:[#allocation5 + $0x8] sm:$0xf]
    %v50 = vld [vmem:[#allocation5 + $0xc] sm:$0xf]
    %v51 = vld [vmem:[%s2] sm:$0x1]
    %v53 = vlaneseq
    %v54 = vshrl.u32 %v53, 7
    %v55 = vsub.s32 0, %v54
    %v56 = vrot.slane %v51, %v55
    %v62 = vunpack.c.l.b16 %v47
    %v63 = vunpack.c.l.b16 %v48
    %v64 = vunpack.c.l.b16 %v49
    %v65 = vunpack.c.l.b16 %v50
    %v66 = vpack.c.b16 %v63, %v62
    %v67 = vpack.c.b16 %v65, %v64
    %vm70 = vcmask 261120
    %v72 = vsel %vm70, %v46, 0
    %74 = vmatprep.subr.bf16.mxu0 0
    %75 = vmatpush1.bf16.msra.mxu0 0
    %76 = vmatprep.subr.bf16.mxu0 0
    %77 = vmatpush1.bf16.msra.mxu0 0
    %78 = vmatprep.subr.bf16.mxu0 0
    %79 = vmatpush1.bf16.msra.mxu0 0
    %80 = vmatprep.subr.bf16.mxu0 0
    %81 = vmatpush1.bf16.msra.mxu0 0
    %82 = vmatprep.subr.bf16.mxu0 0
    %83 = vmatpush1.bf16.msra.mxu0 0
    %84 = vmatprep.subr.bf16.mxu0 0
    %85 = vmatpush1.bf16.msra.mxu0 0
    %86 = vmatprep.subr.bf16.mxu0 0
    %87 = vmatpush1.bf16.msra.mxu0 %v67
    %88 = vmatprep.subr.bf16.mxu0 0
    %89 = vmatpush1.bf16.msra.mxu0 %v66
    %90 = vmatprep.subr.bf16.mxu0 0
    %91 = vmatpush2.bf16.msra.mxu0 0
    %92 = vmatprep.subr.bf16.mxu0 0
    %93 = vmatpush2.bf16.msra.mxu0 0
    %94 = vmatprep.subr.bf16.mxu0 0
    %95 = vmatpush2.bf16.msra.mxu0 0
    %96 = vmatprep.subr.bf16.mxu0 0
    %97 = vmatpush2.bf16.msra.mxu0 0
    %98 = vmatprep.subr.bf16.mxu0 0
    %99 = vmatpush2.bf16.msra.mxu0 0
    %100 = vmatprep.subr.bf16.mxu0 0
    %101 = vmatpush2.bf16.msra.mxu0 0
    %102 = vmatprep.subr.bf16.mxu0 0
    %103 = vmatpush2.bf16.msra.mxu0 0
    %104 = vmatprep.subr.bf16.mxu0 0
    %105 = vmatpush2.bf16.msra.mxu0 0
    %106 = vmatprep.mubr.bf16.mxu0 0
    %107 = vmatmul.mubr.bf16.gmra.mxu0 %v72
    %v108 = vpop.f32.mrf.mxu0
    %v109 = vadd.f32 %v56, %v108
    %v110 = vpop.f32.mrf.mxu0
    %v111 = vpop.f32.mrf.mxu0
    %v112 = vadd.f32 %v56, %v111
    %v113 = vpop.f32.mrf.mxu0
    %114 = vdwg.mxu0
    %v115 = vmul.f32 %v109, 0.5
    %v116 = vmul.f32 %v112, 0.5
    %v117 = vmul.f32 %v109, 0.70710677
    %v118 = vmul.f32 %v112, 0.70710677
    %v119 = verf.f32.pop %v117
    %v120 = verf.f32.pop %v118
    %v121 = vadd.f32 %v119, 1.0
    %v122 = vadd.f32 %v120, 1.0
    %v123 = vmul.f32 %v115, %v121
    %v124 = vmul.f32 %v116, %v122
    %125 = vst [vmem:[#allocation7] sm:$0xff] %v123
    %126 = vst [vmem:[#allocation7 + $0x8] sm:$0xff] %v124
    // Predicated region
    $region22: #{tpu_custom_call.1} parent=1 // pred_check
      _
    $region23: #{tpu_custom_call.1} parent=1 // pred_check_branch
      %128 = sbr.rel (0) target = $region25
    $region24: #{tpu_custom_call.1} parent=1 // pred_region
      %s130 = ssub.s32 256, 256
      %131 = vsyncadd [#allocation4], %s130
      %s132 = sshll.u32 [#allocation7], 4
      %s133 = int_to_ptr.vmem [resolvable:$true] %s132
      %138 = dma.vmem_to_hbm [thread:$0]  %s133, 256, %s3, [#allocation4], 128, 128, 8
    $region25: #{tpu_custom_call.1} parent=1 // pred_fallthru
      _
    // Predicated region
    $region26: #{tpu_custom_call.1} parent=1 // pred_check
      _
    $region27: #{tpu_custom_call.1} parent=1 // pred_check_branch
      %140 = sbr.rel (0) target = $region29
    $region28: #{tpu_custom_call.1} parent=1 // pred_region
      %141 = dma.done [#allocation4], 256
    $region29: #{tpu_custom_call.1} parent=1 // pred_fallthru
      _
    %142 = vsyncpa [#allocation3], 1
    %143 = vsyncpa [#allocation6], 1
    %144 = vsyncpa [#allocation4], 1

</llo_original>
